<compile_context>
chip_gen: v7x
topology: tpu7x:2x2x1
jax: 0.10.0
libtpu: 0.0.40
codegen_flags: <defaults>
</compile_context>

<pallas_src>
import functools

import jax
import jax.numpy as jnp
from jax import lax
from jax.experimental import pallas as pl
from jax.experimental.pallas import tpu as pltpu

LANES = 128
SUBLANES = 8
MAX_TILE_ROWS = 4096     # (4096, 128) f32 tile = 2 MiB per input; sweep 8192 on v7x.


def _num_core_splits() -> int:
    """2 slabs on dual-TensorCore chips (v7x); 1 on single-TC v5e/v6e."""
    try:
        kind = jax.devices()[0].device_kind.lower()
    except Exception:
        return 1
    return 2 if "v7" in kind else 1


def _wmse_kernel(pred_ref, tgt_ref, tot_ref, nz_ref, cnt_ref,
                 tot_acc, nz_acc, cnt_acc, *, tile_rows, rows_per_core):
    """Accumulate squared-error statistics for one (tile_rows, 128) tile.

    Grid = (n_splits, steps): axis 0 is 'parallel' (one slab per TensorCore on
    v7x), axis 1 an 'arbitrary' reduction over row-tiles.  Each step tree-reduces
    its tile to one (8, 128) vreg per statistic (pure VALU adds, no XLU) and adds
    it into tiny VMEM scratch; the cross-lane reductions and SMEM scalar writes
    happen only on the last reduction step.
    """
    i = pl.program_id(1)
    last = pl.num_programs(1) - 1

    @pl.when(i == 0)
    def _init():
        tot_acc[...] = jnp.zeros_like(tot_acc)
        nz_acc[...] = jnp.zeros_like(nz_acc)
        cnt_acc[...] = jnp.zeros_like(cnt_acc)

    p = pred_ref[...].astype(jnp.float32)      # (tile_rows, 128); f32 upcast on-chip
    t = tgt_ref[...].astype(jnp.float32)
    d = p - t
    sq = d * d
    nz = t != 0.0

    groups = tile_rows // SUBLANES

    def _accumulate(sq_v, nz_v):
        nz_sq = jnp.where(nz_v, sq_v, 0.0)     # select, not convert+multiply
        nzf = nz_v.astype(jnp.float32)
        tot_acc[...] += sq_v.reshape(groups, SUBLANES, LANES).sum(axis=0)
        nz_acc[...] += nz_sq.reshape(groups, SUBLANES, LANES).sum(axis=0)
        cnt_acc[...] += nzf.reshape(groups, SUBLANES, LANES).sum(axis=0)

    if rows_per_core % tile_rows != 0:
        # Only the last row-tile of a core slab can be Pallas-padded with
        # unspecified data; keep the steady state mask-free.
        @pl.when(i != last)
        def _steady():
            _accumulate(sq, nz)

        @pl.when(i == last)
        def _ragged():
            row = lax.broadcasted_iota(jnp.int32, (tile_rows, LANES), 0)
            valid = (i * tile_rows + row) < rows_per_core
            _accumulate(jnp.where(valid, sq, 0.0), jnp.logical_and(nz, valid))
    else:
        _accumulate(sq, nz)

    @pl.when(i == last)
    def _finalize():
        tot_ref[0, 0] = jnp.sum(tot_acc[...])
        nz_ref[0, 0] = jnp.sum(nz_acc[...])
        cnt_ref[0, 0] = jnp.sum(cnt_acc[...])


def _kernel_partial_sums(pf, tf, n_aligned, n_splits):
    """Run the Pallas kernel over the chunk-aligned prefix; return 3 f32 partials."""
    rows = n_aligned // LANES
    rows_per_core = rows // n_splits                # multiple of 8 by construction
    pf3 = pf.reshape(n_splits, rows_per_core, LANES)
    tf3 = tf.reshape(n_splits, rows_per_core, LANES)

    tile_rows = min(MAX_TILE_ROWS, rows_per_core)
    steps = (rows_per_core + tile_rows - 1) // tile_rows

    scalar_out = jax.ShapeDtypeStruct((n_splits, 1), jnp.float32)
    scalar_spec = pl.BlockSpec((1, 1), lambda c, i: (c, 0),
                               memory_space=pltpu.MemorySpace.SMEM)
    # TODO(synk): pipeline_mode=pl.Buffered(3) on the input specs is a sweep knob
    # if a v7x profile still shows exposed DMA at this tile size.
    in_spec = pl.BlockSpec((None, tile_rows, LANES), lambda c, i: (c, i, 0))

    kernel = functools.partial(
        _wmse_kernel, tile_rows=tile_rows, rows_per_core=rows_per_core)

    tot_p, nz_p, cnt_p = pl.pallas_call(
        kernel,
        out_shape=(scalar_out, scalar_out, scalar_out),
        grid_spec=pltpu.PrefetchScalarGridSpec(
            num_scalar_prefetch=0,
            grid=(n_splits, steps),
            in_specs=[in_spec, in_spec],
            out_specs=(scalar_spec, scalar_spec, scalar_spec),
            scratch_shapes=[pltpu.VMEM((SUBLANES, LANES), jnp.float32)] * 3,
        ),
        compiler_params=pltpu.CompilerParams(
            dimension_semantics=("parallel", "arbitrary"),
            vmem_limit_bytes=32 * 1024 * 1024,
        ),
    )(pf3, tf3)

    return jnp.sum(tot_p), jnp.sum(nz_p), jnp.sum(cnt_p)


@functools.partial(jax.jit, static_argnames=("non_zero_weight", "zero_weight"))
def weighted_mse_loss(output, target, non_zero_weight=0.8, zero_weight=0.2):
    assert output.shape == target.shape
    n_elem = output.size
    out_dtype = output.dtype

    n_splits = _num_core_splits()
    chunk = n_splits * SUBLANES * LANES

    # Row-major flatten: layout-preserving reshape, no extra HBM pass.  Inputs
    # stay in their native dtype; the f32 upcast happens inside the kernel.
    pf = jnp.ravel(output)
    tf = jnp.ravel(target)

    n_aligned = (n_elem // chunk) * chunk

    tot_sum = jnp.float32(0.0)
    nz_sum = jnp.float32(0.0)
    nz_cnt = jnp.float32(0.0)

    if n_aligned > 0:
        pm = pf if n_aligned == n_elem else pf[:n_aligned]
        tm = tf if n_aligned == n_elem else tf[:n_aligned]
        t_s, n_s, c_s = _kernel_partial_sums(pm, tm, n_aligned, n_splits)
        tot_sum = tot_sum + t_s
        nz_sum = nz_sum + n_s
        nz_cnt = nz_cnt + c_s

    if n_aligned != n_elem:
        # Tail of < chunk (<= 2047) elements: fold in with a tiny plain-JAX
        # reduction instead of a jnp.pad copy of the full inputs.
        pt = pf[n_aligned:].astype(jnp.float32)
        tt = tf[n_aligned:].astype(jnp.float32)
        d2 = (pt - tt) ** 2
        m = tt != 0.0
        tot_sum = tot_sum + jnp.sum(d2)
        nz_sum = nz_sum + jnp.sum(jnp.where(m, d2, 0.0))
        nz_cnt = nz_cnt + jnp.sum(m.astype(jnp.float32))

    # Note: the nonzero count is accumulated in f32 — exact up to ~2^24 nonzero
    # elements, ~1e-7 relative error on the denominator beyond that.
    total_mse = tot_sum / jnp.float32(n_elem)
    non_zero_mse = jnp.where(nz_cnt > 0, nz_sum / jnp.maximum(nz_cnt, 1.0), 0.0)
    loss = non_zero_weight * non_zero_mse + zero_weight * total_mse
    # The PyTorch module returns the loss in the inputs' dtype.
    return loss.astype(out_dtype)


def _reference_loss(output, target, non_zero_weight=0.8, zero_weight=0.2):
    """Pure-JAX reference mirroring the PyTorch forward."""
    d2 = (output.astype(jnp.float32) - target.astype(jnp.float32)) ** 2
    total_mse = jnp.mean(d2)
    mask = target != 0
    cnt = jnp.sum(mask)
    nz_mse = jnp.where(cnt > 0,
                       jnp.sum(jnp.where(mask, d2, 0.0)) / jnp.maximum(cnt, 1),
                       0.0)
    return (non_zero_weight * nz_mse + zero_weight * total_mse).astype(output.dtype)


if __name__ == "__main__":
    key = jax.random.PRNGKey(0)

    def make_inputs(k, shape):
        k1, k2, k3 = jax.random.split(k, 3)
        out = jax.random.normal(k1, shape, dtype=jnp.float32)
        tgt = jax.random.normal(k2, shape, dtype=jnp.float32)
        zero_mask = jax.random.bernoulli(k3, p=0.3, shape=shape)
        tgt = jnp.where(zero_mask, 0.0, tgt)
        return out, tgt

    k_a, k_b = jax.random.split(key)

    # Main case: small NCHW reconstruction loss; exercises the Pallas kernel path.
    out_a, tgt_a = make_inputs(k_a, (2, 4, 16, 16))          # 2048 elements
    loss_a = weighted_mse_loss(out_a, tgt_a)
    jax.block_until_ready(loss_a)
    assert jnp.allclose(loss_a, _reference_loss(out_a, tgt_a), rtol=1e-5, atol=1e-6), \
        (loss_a, _reference_loss(out_a, tgt_a))

    # Awkward size: exercises kernel prefix + plain-JAX tail handling.
    out_b, tgt_b = make_inputs(k_b, (5, 4, 12, 13))          # 3120 elements
    loss_b = weighted_mse_loss(out_b, tgt_b)
    jax.block_until_ready(loss_b)
    assert jnp.allclose(loss_b, _reference_loss(out_b, tgt_b), rtol=1e-5, atol=1e-6), \
        (loss_b, _reference_loss(out_b, tgt_b))

    print("KERNEL_OK")
</pallas_src>

<mosaic_0001>
module attributes {stable_mosaic.version = 11 : i64} {
  func.func @_wmse_kernel(%arg0: i32, %arg1: i32, %arg2: memref<1x16x128xf32, #tpu.memory_space<vmem>>, %arg3: memref<1x16x128xf32, #tpu.memory_space<vmem>>, %arg4: memref<1x1xf32, #tpu.memory_space<smem>>, %arg5: memref<1x1xf32, #tpu.memory_space<smem>>, %arg6: memref<1x1xf32, #tpu.memory_space<smem>>, %arg7: memref<8x128xf32, #tpu.memory_space<vmem>>, %arg8: memref<8x128xf32, #tpu.memory_space<vmem>>, %arg9: memref<8x128xf32, #tpu.memory_space<vmem>>) attributes {dimension_semantics = [#tpu.dimension_semantics<parallel>, #tpu.dimension_semantics<arbitrary>], iteration_bounds = array<i64: 1, 1>, scalar_prefetch = 0 : i64, scratch_operands = 3 : i64, tpu.core_type = #tpu.core_type<tc>, window_params = [{transform_indices = @transform_0, window_bounds = array<i64: 1, 16, 128>}, {transform_indices = @transform_1, window_bounds = array<i64: 1, 16, 128>}, {transform_indices = @transform_2, window_bounds = array<i64: 1, 1>}, {transform_indices = @transform_3, window_bounds = array<i64: 1, 1>}, {transform_indices = @transform_4, window_bounds = array<i64: 1, 1>}]} {
    %c0_i32 = arith.constant 0 : i32
    %0 = arith.cmpi eq, %arg1, %c0_i32 : i32
    %1 = arith.extui %0 : i1 to i32
    %c0_i32_0 = arith.constant 0 : i32
    %2 = arith.cmpi ne, %1, %c0_i32_0 : i32
    scf.if %2 {
      %cst_24 = arith.constant 0.000000e+00 : f32
      %33 = vector.broadcast %cst_24 : f32 to vector<8x128xf32>
      %c0_25 = arith.constant 0 : index
      %c0_26 = arith.constant 0 : index
      %34 = vector.load %arg7[%c0_25, %c0_26] : memref<8x128xf32, #tpu.memory_space<vmem>>, vector<8x128xf32>
      tpu.vector_store %arg7[%c0_25, %c0_26], %33 {strides = array<i32>} : memref<8x128xf32, #tpu.memory_space<vmem>>, vector<8x128xf32>,
      %cst_27 = arith.constant 0.000000e+00 : f32
      %35 = vector.broadcast %cst_27 : f32 to vector<8x128xf32>
      %c0_28 = arith.constant 0 : index
      %c0_29 = arith.constant 0 : index
      %36 = vector.load %arg8[%c0_28, %c0_29] : memref<8x128xf32, #tpu.memory_space<vmem>>, vector<8x128xf32>
      tpu.vector_store %arg8[%c0_28, %c0_29], %35 {strides = array<i32>} : memref<8x128xf32, #tpu.memory_space<vmem>>, vector<8x128xf32>,
      %cst_30 = arith.constant 0.000000e+00 : f32
      %37 = vector.broadcast %cst_30 : f32 to vector<8x128xf32>
      %c0_31 = arith.constant 0 : index
      %c0_32 = arith.constant 0 : index
      %38 = vector.load %arg9[%c0_31, %c0_32] : memref<8x128xf32, #tpu.memory_space<vmem>>, vector<8x128xf32>
      tpu.vector_store %arg9[%c0_31, %c0_32], %37 {strides = array<i32>} : memref<8x128xf32, #tpu.memory_space<vmem>>, vector<8x128xf32>,
    } else {
    }
    %c0 = arith.constant 0 : index
    %c0_1 = arith.constant 0 : index
    %c0_2 = arith.constant 0 : index
    %3 = vector.load %arg2[%c0, %c0_1, %c0_2] : memref<1x16x128xf32, #tpu.memory_space<vmem>>, vector<1x16x128xf32>
    %4 = vector.shape_cast %3 : vector<1x16x128xf32> to vector<16x128xf32>
    %c0_3 = arith.constant 0 : index
    %c0_4 = arith.constant 0 : index
    %c0_5 = arith.constant 0 : index
    %5 = vector.load %arg3[%c0_3, %c0_4, %c0_5] : memref<1x16x128xf32, #tpu.memory_space<vmem>>, vector<1x16x128xf32>
    %6 = vector.shape_cast %5 : vector<1x16x128xf32> to vector<16x128xf32>
    %7 = arith.subf %4, %6 : vector<16x128xf32>
    %8 = arith.mulf %7, %7 : vector<16x128xf32>
    %cst = arith.constant 0.000000e+00 : f32
    %9 = vector.broadcast %cst : f32 to vector<16x128xf32>
    %10 = arith.cmpf one, %6, %9 : vector<16x128xf32>
    %cst_6 = arith.constant 0.000000e+00 : f32
    %11 = vector.broadcast %cst_6 : f32 to vector<16x128xf32>
    %12 = arith.select %10, %8, %11 : vector<16x128xi1>, vector<16x128xf32>
    %13 = arith.extui %10 : vector<16x128xi1> to vector<16x128xi32>
    %14 = arith.sitofp %13 : vector<16x128xi32> to vector<16x128xf32>
    %c0_7 = arith.constant 0 : index
    %c0_8 = arith.constant 0 : index
    %15 = vector.load %arg7[%c0_7, %c0_8] : memref<8x128xf32, #tpu.memory_space<vmem>>, vector<8x128xf32>
    %16 = vector.shape_cast %8 : vector<16x128xf32> to vector<2x8x128xf32>
    %cst_9 = arith.constant dense<0.000000e+00> : vector<8x128xf32>
    %17 = vector.multi_reduction <add>, %16, %cst_9 [0] : vector<2x8x128xf32> to vector<8x128xf32>
    %18 = arith.addf %15, %17 : vector<8x128xf32>
    %c0_10 = arith.constant 0 : index
    %c0_11 = arith.constant 0 : index
    %19 = vector.load %arg7[%c0_10, %c0_11] : memref<8x128xf32, #tpu.memory_space<vmem>>, vector<8x128xf32>
    tpu.vector_store %arg7[%c0_10, %c0_11], %18 {strides = array<i32>} : memref<8x128xf32, #tpu.memory_space<vmem>>, vector<8x128xf32>,
    %c0_12 = arith.constant 0 : index
    %c0_13 = arith.constant 0 : index
    %20 = vector.load %arg8[%c0_12, %c0_13] : memref<8x128xf32, #tpu.memory_space<vmem>>, vector<8x128xf32>
    %21 = vector.shape_cast %12 : vector<16x128xf32> to vector<2x8x128xf32>
    %cst_14 = arith.constant dense<0.000000e+00> : vector<8x128xf32>
    %22 = vector.multi_reduction <add>, %21, %cst_14 [0] : vector<2x8x128xf32> to vector<8x128xf32>
    %23 = arith.addf %20, %22 : vector<8x128xf32>
    %c0_15 = arith.constant 0 : index
    %c0_16 = arith.constant 0 : index
    %24 = vector.load %arg8[%c0_15, %c0_16] : memref<8x128xf32, #tpu.memory_space<vmem>>, vector<8x128xf32>
    tpu.vector_store %arg8[%c0_15, %c0_16], %23 {strides = array<i32>} : memref<8x128xf32, #tpu.memory_space<vmem>>, vector<8x128xf32>,
    %c0_17 = arith.constant 0 : index
    %c0_18 = arith.constant 0 : index
    %25 = vector.load %arg9[%c0_17, %c0_18] : memref<8x128xf32, #tpu.memory_space<vmem>>, vector<8x128xf32>
    %26 = vector.shape_cast %14 : vector<16x128xf32> to vector<2x8x128xf32>
    %cst_19 = arith.constant dense<0.000000e+00> : vector<8x128xf32>
    %27 = vector.multi_reduction <add>, %26, %cst_19 [0] : vector<2x8x128xf32> to vector<8x128xf32>
    %28 = arith.addf %25, %27 : vector<8x128xf32>
    %c0_20 = arith.constant 0 : index
    %c0_21 = arith.constant 0 : index
    %29 = vector.load %arg9[%c0_20, %c0_21] : memref<8x128xf32, #tpu.memory_space<vmem>>, vector<8x128xf32>
    tpu.vector_store %arg9[%c0_20, %c0_21], %28 {strides = array<i32>} : memref<8x128xf32, #tpu.memory_space<vmem>>, vector<8x128xf32>,
    %c0_i32_22 = arith.constant 0 : i32
    %30 = arith.cmpi eq, %arg1, %c0_i32_22 : i32
    %31 = arith.extui %30 : i1 to i32
    %c0_i32_23 = arith.constant 0 : i32
    %32 = arith.cmpi ne, %31, %c0_i32_23 : i32
    scf.if %32 {
      %c0_24 = arith.constant 0 : index
      %c0_25 = arith.constant 0 : index
      %33 = vector.load %arg7[%c0_24, %c0_25] : memref<8x128xf32, #tpu.memory_space<vmem>>, vector<8x128xf32>
      %34 = vector.shape_cast %33 : vector<8x128xf32> to vector<1x8x128xf32>
      %cst_26 = arith.constant dense<0.000000e+00> : vector<1xf32>
      %35 = vector.multi_reduction <add>, %34, %cst_26 [1, 2] : vector<1x8x128xf32> to vector<1xf32>
      %36 = vector.shape_cast %35 : vector<1xf32> to vector<1x1x1xf32>
      %37 = vector.extract %36[0, 0, 0] : f32 from vector<1x1x1xf32>
      %c0_27 = arith.constant 0 : index
      %c0_28 = arith.constant 0 : index
      %38 = memref.load %arg4[%c0_27, %c0_28] : memref<1x1xf32, #tpu.memory_space<smem>>
      memref.store %37, %arg4[%c0_27, %c0_28] : memref<1x1xf32, #tpu.memory_space<smem>>
      %c0_29 = arith.constant 0 : index
      %c0_30 = arith.constant 0 : index
      %39 = vector.load %arg8[%c0_29, %c0_30] : memref<8x128xf32, #tpu.memory_space<vmem>>, vector<8x128xf32>
      %40 = vector.shape_cast %39 : vector<8x128xf32> to vector<1x8x128xf32>
      %cst_31 = arith.constant dense<0.000000e+00> : vector<1xf32>
      %41 = vector.multi_reduction <add>, %40, %cst_31 [1, 2] : vector<1x8x128xf32> to vector<1xf32>
      %42 = vector.shape_cast %41 : vector<1xf32> to vector<1x1x1xf32>
      %43 = vector.extract %42[0, 0, 0] : f32 from vector<1x1x1xf32>
      %c0_32 = arith.constant 0 : index
      %c0_33 = arith.constant 0 : index
      %44 = memref.load %arg5[%c0_32, %c0_33] : memref<1x1xf32, #tpu.memory_space<smem>>
      memref.store %43, %arg5[%c0_32, %c0_33] : memref<1x1xf32, #tpu.memory_space<smem>>
      %c0_34 = arith.constant 0 : index
      %c0_35 = arith.constant 0 : index
      %45 = vector.load %arg9[%c0_34, %c0_35] : memref<8x128xf32, #tpu.memory_space<vmem>>, vector<8x128xf32>
      %46 = vector.shape_cast %45 : vector<8x128xf32> to vector<1x8x128xf32>
      %cst_36 = arith.constant dense<0.000000e+00> : vector<1xf32>
      %47 = vector.multi_reduction <add>, %46, %cst_36 [1, 2] : vector<1x8x128xf32> to vector<1xf32>
      %48 = vector.shape_cast %47 : vector<1xf32> to vector<1x1x1xf32>
      %49 = vector.extract %48[0, 0, 0] : f32 from vector<1x1x1xf32>
      %c0_37 = arith.constant 0 : index
      %c0_38 = arith.constant 0 : index
      %50 = memref.load %arg6[%c0_37, %c0_38] : memref<1x1xf32, #tpu.memory_space<smem>>
      memref.store %49, %arg6[%c0_37, %c0_38] : memref<1x1xf32, #tpu.memory_space<smem>>
    } else {
    }
    return
  }
  func.func @transform_0(%arg0: i32, %arg1: i32) -> (i32, i32, i32) {
    %c0_i32 = arith.constant 0 : i32
    %c0_i32_0 = arith.constant 0 : i32
    return %arg0, %arg1, %c0_i32 : i32, i32, i32
  }
  func.func @transform_1(%arg0: i32, %arg1: i32) -> (i32, i32, i32) {
    %c0_i32 = arith.constant 0 : i32
    %c0_i32_0 = arith.constant 0 : i32
    return %arg0, %arg1, %c0_i32 : i32, i32, i32
  }
  func.func @transform_2(%arg0: i32, %arg1: i32) -> (i32, i32) {
    %c0_i32 = arith.constant 0 : i32
    %c0_i32_0 = arith.constant 0 : i32
    return %arg0, %c0_i32 : i32, i32
  }
  func.func @transform_3(%arg0: i32, %arg1: i32) -> (i32, i32) {
    %c0_i32 = arith.constant 0 : i32
    %c0_i32_0 = arith.constant 0 : i32
    return %arg0, %c0_i32 : i32, i32
  }
  func.func @transform_4(%arg0: i32, %arg1: i32) -> (i32, i32) {
    %c0_i32 = arith.constant 0 : i32
    %c0_i32_0 = arith.constant 0 : i32
    return %arg0, %c0_i32 : i32, i32
  }
}

</mosaic_0001>

<llo_original>
// kernel: weighted_mse_loss.1
$region0: #{weighted_mse_loss.1}
  #allocation0 [shape = 'u32[]', space=smem, size = 0x4, offset = 0x4, fixed_abs, tag = 'smem constant byte address 0x4 - core index']
  #allocation1 [shape = 'u32[144,128]{1,0:T(1,128)}', space=vmem, size = 0x12000, scoped, tag = 'internal scratch']
  #allocation2 [shape = 'f32[8,128]{1,0:T(8,128)}', space=vmem, size = 0x1000, scoped, tag = 'scratch operand']
  #allocation3 [shape = 'f32[8,128]{1,0:T(8,128)}', space=vmem, size = 0x1000, scoped, tag = 'scratch operand']
  #allocation4 [shape = 'f32[8,128]{1,0:T(8,128)}', space=vmem, size = 0x1000, scoped, tag = 'scratch operand']
  %s0 = inlined_call_operand.vmem [shape: f32[1,16,128], index: 0, kind: input, shape index: {}]
  %s1 = inlined_call_operand.vmem [shape: f32[1,16,128], index: 1, kind: input, shape index: {}]
  %s2 = inlined_call_operand.hbm [shape: f32[1,1], index: 2, kind: output, shape index: {0}]
  %s3 = inlined_call_operand.hbm [shape: f32[1,1], index: 3, kind: output, shape index: {1}]
  %s4 = inlined_call_operand.hbm [shape: f32[1,1], index: 4, kind: output, shape index: {2}]
  %5 = xla_tuple %s2, %s3, %s4
  %s6 = sld [smem:[#allocation0]]
  $region42: #{weighted_mse_loss.1} parent=0
    _
  %s8 = ssub.s32 1, %s6
  %s9 = scalar_select 0, %s8, %s6
  $region1: #{weighted_mse_loss.1} parent=0
    #allocation5 [shape = 'u8[512]{0}', space=smem, size = 0x200, scoped, tag = 'output window, operand 0, single buffered']
    #allocation6 [shape = 's32[1]{0}', space=sflag, size = 0x4, scoped, tag = 'scoped memory for weighted_mse_loss.1']
    #allocation7 [shape = 'u8[512]{0}', space=smem, size = 0x200, scoped, tag = 'output window, operand 1, single buffered']
    #allocation8 [shape = 's32[1]{0}', space=sflag, size = 0x4, scoped, tag = 'scoped memory for weighted_mse_loss.1']
    #allocation9 [shape = 'u8[512]{0}', space=smem, size = 0x200, scoped, tag = 'output window, operand 2, single buffered']
    %10 = vsyncpa [#allocation6], 0
    %11 = vsyncpa [#allocation8], 0
    // Predicated region
    $region2: #{weighted_mse_loss.1} parent=1 // pred_check
      _
    $region3: #{weighted_mse_loss.1} parent=1 // pred_check_branch
      %13 = sbr.rel (0) target = $region5
    $region4: #{weighted_mse_loss.1} parent=1 // pred_region
      _
    $region5: #{weighted_mse_loss.1} parent=1 // pred_fallthru
      _
    // Predicated region
    $region6: #{weighted_mse_loss.1} parent=1 // pred_check
      _
    $region7: #{weighted_mse_loss.1} parent=1 // pred_check_branch
      %15 = sbr.rel (0) target = $region9
    $region8: #{weighted_mse_loss.1} parent=1 // pred_region
      _
    $region9: #{weighted_mse_loss.1} parent=1 // pred_fallthru
      _
    %p16 = scmp.eq.s32.totalorder 0, 0
    // Predicated region
    $region10: #{weighted_mse_loss.1} parent=1 // pred_check
      %p17 = pneg %p16
    $region11: #{weighted_mse_loss.1} parent=1 // pred_check_branch
      %19 = sbr.rel (%p17) target = $region13
    $region12: #{weighted_mse_loss.1} parent=1 // pred_region
      %20 = vst [vmem:[#allocation2] sm:$0xff] 0.0
      %21 = vst [vmem:[#allocation3] sm:$0xff] 0.0
      %22 = vst [vmem:[#allocation4] sm:$0xff] 0.0
    $region13: #{weighted_mse_loss.1} parent=1 // pred_fallthru
      _
    %v23 = vld [vmem:[%s0] sm:$0xff]
    %v24 = vld [vmem:[%s0 + $0x8] sm:$0xff]
    %v25 = vld [vmem:[%s1] sm:$0xff]
    %v26 = vld [vmem:[%s1 + $0x8] sm:$0xff]
    %v27 = vsub.f32 %v23, %v25
    %v28 = vsub.f32 %v24, %v26
    %v29 = vmul.f32 %v27, %v27
    %v30 = vmul.f32 %v28, %v28
    %vm31 = vcmp.ne.f32.partialorder %v25, 0.0
    %vm32 = vcmp.ne.f32.partialorder %v26, 0.0
    %v33 = vsel %vm31, %v29, 0.0
    %v34 = vsel %vm32, %v30, 0.0
    %v35 = vsel %vm31, 1, 0
    %v36 = vsel %vm32, 1, 0
    %v37 = vcvt.s32.f32 %v35
    %v38 = vcvt.s32.f32 %v36
    %v39 = vld [vmem:[#allocation2] sm:$0xff]
    %v40 = vadd.f32 %v29, %v30
    %v41 = vadd.f32 %v39, %v40
    %42 = vst [vmem:[#allocation2] sm:$0xff] %v41
    %v43 = vld [vmem:[#allocation3] sm:$0xff]
    %v44 = vadd.f32 %v33, %v34
    %v45 = vadd.f32 %v43, %v44
    %46 = vst [vmem:[#allocation3] sm:$0xff] %v45
    %v47 = vld [vmem:[#allocation4] sm:$0xff]
    %v48 = vadd.f32 %v37, %v38
    %v49 = vadd.f32 %v47, %v48
    %50 = vst [vmem:[#allocation4] sm:$0xff] %v49
    // Predicated region
    $region14: #{weighted_mse_loss.1} parent=1 // pred_check
      %p51 = pneg %p16
    $region15: #{weighted_mse_loss.1} parent=1 // pred_check_branch
      %53 = sbr.rel (%p51) target = $region17
    $region16: #{weighted_mse_loss.1} parent=1 // pred_region
      %v54 = vld [vmem:[#allocation2] sm:$0xff]
      %55 = vadd.xlane.f32.xlu0 %v54
      %v56 = vpop.xlane.xlu0 %55
      %v57 = vrot.slane %v56, 4
      %v58 = vadd.f32 %v56, %v57
      %v59 = vrot.slane %v58, 2
      %v60 = vadd.f32 %v58, %v59
      %v61 = vrot.slane %v60, 1
      %v62 = vadd.f32 %v60, %v61
      %s63 = vtos %v62
      %s64 = scalar_lea.smem [#allocation5], 0
      %65 = sst [smem:[%s64]] %s63
      %v66 = vld [vmem:[#allocation3] sm:$0xff]
      %67 = vadd.xlane.f32.xlu0 %v66
      %v68 = vpop.xlane.xlu0 %67
      %v69 = vrot.slane %v68, 4
      %v70 = vadd.f32 %v68, %v69
      %v71 = vrot.slane %v70, 2
      %v72 = vadd.f32 %v70, %v71
      %v73 = vrot.slane %v72, 1
      %v74 = vadd.f32 %v72, %v73
      %s75 = vtos %v74
      %s76 = scalar_lea.smem [#allocation7], 0
      %77 = sst [smem:[%s76]] %s75
      %v78 = vld [vmem:[#allocation4] sm:$0xff]
      %79 = vadd.xlane.f32.xlu0 %v78
      %v80 = vpop.xlane.xlu0 %79
      %v81 = vrot.slane %v80, 4
      %v82 = vadd.f32 %v80, %v81
      %v83 = vrot.slane %v82, 2
      %v84 = vadd.f32 %v82, %v83
      %v85 = vrot.slane %v84, 1
      %v86 = vadd.f32 %v84, %v85
      %s87 = vtos %v86
      %s88 = scalar_lea.smem [#allocation9], 0
      %89 = sst [smem:[%s88]] %s87
    $region17: #{weighted_mse_loss.1} parent=1 // pred_fallthru
      _
    // Predicated region
    $region18: #{weighted_mse_loss.1} parent=1 // pred_check
      _
    $region19: #{weighted_mse_loss.1} parent=1 // pred_check_branch
      %91 = sbr.rel (0) target = $region21
    $region20: #{weighted_mse_loss.1} parent=1 // pred_region
      %s93 = ssub.s32 16, 16
      %94 = vsyncadd [#allocation6], %s93
      %97 = dma.smem_to_hbm [#allocation5], 16, %s2, [#allocation6]
    $region21: #{weighted_mse_loss.1} parent=1 // pred_fallthru
      _
    // Predicated region
    $region22: #{weighted_mse_loss.1} parent=1 // pred_check
      _
    $region23: #{weighted_mse_loss.1} parent=1 // pred_check_branch
      %99 = sbr.rel (0) target = $region25
    $region24: #{weighted_mse_loss.1} parent=1 // pred_region
      %s101 = ssub.s32 16, 16
      %102 = vsyncadd [#allocation8], %s101
      %105 = dma.smem_to_hbm [#allocation7], 16, %s3, [#allocation8]
    $region25: #{weighted_mse_loss.1} parent=1 // pred_fallthru
      _
    // Predicated region
    $region26: #{weighted_mse_loss.1} parent=1 // pred_check
      _
    $region27: #{weighted_mse_loss.1} parent=1 // pred_check_branch
      %107 = sbr.rel (0) target = $region29
    $region28: #{weighted_mse_loss.1} parent=1 // pred_region
      %s109 = ssub.s32 16, 16
      %110 = vsyncadd [#allocation8], %s109
      %113 = dma.smem_to_hbm [#allocation9], 16, %s4, [#allocation8]
    $region29: #{weighted_mse_loss.1} parent=1 // pred_fallthru
      _
    // Predicated region
    $region30: #{weighted_mse_loss.1} parent=1 // pred_check
      _
    $region31: #{weighted_mse_loss.1} parent=1 // pred_check_branch
      %115 = sbr.rel (0) target = $region33
    $region32: #{weighted_mse_loss.1} parent=1 // pred_region
      %116 = dma.done [#allocation6], 16
    $region33: #{weighted_mse_loss.1} parent=1 // pred_fallthru
      _
    // Predicated region
    $region34: #{weighted_mse_loss.1} parent=1 // pred_check
      _
    $region35: #{weighted_mse_loss.1} parent=1 // pred_check_branch
      %118 = sbr.rel (0) target = $region37
    $region36: #{weighted_mse_loss.1} parent=1 // pred_region
      %119 = dma.done [#allocation8], 16
    $region37: #{weighted_mse_loss.1} parent=1 // pred_fallthru
      _
    // Predicated region
    $region38: #{weighted_mse_loss.1} parent=1 // pred_check
      _
    $region39: #{weighted_mse_loss.1} parent=1 // pred_check_branch
      %121 = sbr.rel (0) target = $region41
    $region40: #{weighted_mse_loss.1} parent=1 // pred_region
      %122 = dma.done [#allocation8], 16
    $region41: #{weighted_mse_loss.1} parent=1 // pred_fallthru
      _
    %123 = sfence
    %124 = vsyncpa [#allocation6], 1
    %125 = vsyncpa [#allocation8], 1

</llo_original>
